<compile_context>
chip_gen: v6e
topology: v6e:2x2x1
jax: 0.10.0
libtpu: 0.0.40
codegen_flags: <defaults>
</compile_context>

<pallas_src>
import functools

import jax
import jax.numpy as jnp
from jax.experimental import pallas as pl
from jax.experimental.pallas import tpu as pltpu


# ----------------------------------------------------------------------------
# Pallas kernel: fused (2x2 stride-1 conv over space-to-depth input) + PReLU.
# ----------------------------------------------------------------------------
def _upsampler_conv_kernel(x_ref, w_ref, alpha_ref, o_ref, *, wq):
    # x_ref     : (1, 1, KC, TIN)  bf16  channel-first flattened input tile
    #                               (KC = 4*Cin, spatial = rows of width Wq)
    # w_ref     : (4, Cout, KC)    bf16  per-tap weights, tap t = 2*dy + dx
    # alpha_ref : (1,)             f32   shared PReLU alpha (SMEM scalar)
    # o_ref     : (1, 1, Cout, L)  f32   channel-first, lane-dense output tile
    cout = o_ref.shape[2]
    l_out = o_ref.shape[3]
    x = x_ref[0, 0]                                   # (KC, TIN)
    acc = jnp.zeros((cout, l_out), jnp.float32)
    for t in range(4):                                # 2x2 taps, fully unrolled
        off = (t // 2) * wq + (t % 2)                 # static lane offset
        acc = acc + jnp.dot(w_ref[t], x[:, off:off + l_out],
                            preferred_element_type=jnp.float32)
    alpha = alpha_ref[0]
    acc = jnp.where(acc >= 0.0, acc, acc * alpha)     # PReLU (shared alpha)
    o_ref[0, 0] = acc


def _default_tile_rows(ho, wq, kc, cout):
    # ~4 MiB of live tile data (bf16 input + f32 output) per buffer set so the
    # double-buffered pipeline stays well below VMEM limits on v5e/v6e/v7x.
    bytes_per_row = wq * (kc * 2 + cout * 4)
    return max(1, min(ho, (4 * 1024 * 1024) // max(bytes_per_row, 1)))


# ----------------------------------------------------------------------------
# Upsampler forward: conv(4x4, s2, reflect pad 1, no bias) -> PixelShuffle(2)
#                    -> PReLU.  Public interface is NCHW (PyTorch-compatible).
# ----------------------------------------------------------------------------
def upsampler_forward(params, x_nchw, *, tile_rows=None):
    w = params["w"]                                   # (Cout, Cin, 4, 4)
    alpha = jnp.asarray(params["alpha"], jnp.float32).reshape(1)
    n, c_in, h, wdt = x_nchw.shape
    c_out = w.shape[0]
    assert h % 2 == 0 and wdt % 2 == 0 and c_out % 4 == 0
    ho, wo = h // 2, wdt // 2                         # conv output (stride 2)
    hq, wq = ho + 1, wo + 1                           # space-to-depth grid
    kc = 4 * c_in

    # reflect pad by 1, then space-to-depth x2 into channel-first flattened:
    #   xs[n, p*2*Cin + q*Cin + ci, a*Wq + b] = xpad[n, ci, 2a+p, 2b+q]
    xp = jnp.pad(x_nchw, ((0, 0), (0, 0), (1, 1), (1, 1)), mode="reflect")
    xs = xp.reshape(n, c_in, hq, 2, wq, 2)
    xs = xs.transpose(0, 3, 5, 1, 2, 4).reshape(n, kc, hq * wq)

    # matching per-tap weights: wt[2*dy+dx, co, p*2*Cin+q*Cin+ci]
    #   = w[co, ci, 2*dy+p, 2*dx+q]
    wt = w.reshape(c_out, c_in, 2, 2, 2, 2).transpose(2, 4, 0, 3, 5, 1)
    wt = wt.reshape(4, c_out, kc).astype(jnp.bfloat16)

    # ---- spatial row tiling (halo baked into per-tile input slabs) --------
    th = int(tile_rows) if tile_rows is not None else _default_tile_rows(
        ho, wq, kc, c_out)
    th = max(1, min(th, ho))
    n_tiles = pl.cdiv(ho, th)
    l_valid = th * wq                                 # valid flattened cols/tile
    l_pad = ((l_valid + 127) // 128) * 128            # lane-dense output length
    tin = l_pad + wq + 1                              # input cols/tile (+halo)

    total_cols = (n_tiles - 1) * l_valid + tin
    xs = jnp.pad(xs, ((0, 0), (0, 0), (0, total_cols - hq * wq)))
    x_tiles = jnp.stack([xs[:, :, r * l_valid: r * l_valid + tin]
                         for r in range(n_tiles)], axis=1)   # (N, T, KC, TIN)
    x_tiles = x_tiles.astype(jnp.bfloat16)

    kernel = functools.partial(_upsampler_conv_kernel, wq=wq)
    out_tiled = pl.pallas_call(
        kernel,
        out_shape=jax.ShapeDtypeStruct((n, n_tiles, c_out, l_pad), jnp.float32),
        grid=(n, n_tiles),
        in_specs=[
            pl.BlockSpec((1, 1, kc, tin), lambda i, r: (i, r, 0, 0)),
            pl.BlockSpec((4, c_out, kc), lambda i, r: (0, 0, 0)),
            pl.BlockSpec(memory_space=pltpu.MemorySpace.SMEM),
        ],
        out_specs=pl.BlockSpec((1, 1, c_out, l_pad), lambda i, r: (i, r, 0, 0)),
        compiler_params=pltpu.CompilerParams(
            dimension_semantics=("parallel", "parallel"),
            vmem_limit_bytes=48 * 1024 * 1024),
    )(x_tiles, wt, alpha)

    # ---- reassemble tiles, drop padding, PixelShuffle(2), stay in NCHW ----
    out = out_tiled[:, :, :, :l_valid]
    out = out.reshape(n, n_tiles, c_out, th, wq)
    out = out.transpose(0, 2, 1, 3, 4).reshape(n, c_out, n_tiles * th, wq)
    out = out[:, :, :ho, :wo]                         # (N, Cout, Ho, Wo)
    cf = c_out // 4
    out = out.reshape(n, cf, 2, 2, ho, wo)            # ch = cf*4 + i*2 + j
    out = out.transpose(0, 1, 4, 2, 5, 3).reshape(n, cf, h, wdt)
    return out


# ----------------------------------------------------------------------------
# Pure-JAX reference (for correctness check) and parameter init.
# ----------------------------------------------------------------------------
def upsampler_reference(params, x_nchw):
    w = params["w"]
    alpha = jnp.asarray(params["alpha"], jnp.float32)
    xp = jnp.pad(x_nchw, ((0, 0), (0, 0), (1, 1), (1, 1)), mode="reflect")
    y = jax.lax.conv_general_dilated(
        xp, w, window_strides=(2, 2), padding="VALID",
        dimension_numbers=("NCHW", "OIHW", "NCHW"),
        precision=jax.lax.Precision.HIGHEST)
    n, c, ho, wo = y.shape
    cf = c // 4
    y = y.reshape(n, cf, 2, 2, ho, wo).transpose(0, 1, 4, 2, 5, 3)
    y = y.reshape(n, cf, 2 * ho, 2 * wo)
    return jnp.where(y >= 0.0, y, alpha * y)


def init_params(key, in_channels, out_channels):
    # Conv2d(in, out, 4, 2, 1, bias=False); PReLU() shared alpha init 0.25.
    fan_in = in_channels * 4 * 4
    w = jax.random.normal(key, (out_channels, in_channels, 4, 4), jnp.float32)
    w = w * (2.0 / fan_in) ** 0.5
    return {"w": w, "alpha": jnp.float32(0.25)}


# ----------------------------------------------------------------------------
if __name__ == "__main__":
    key = jax.random.PRNGKey(0)
    wkey, xkey = jax.random.split(key)

    # Small config consistent with the module: PixelShuffle(2) needs
    # out_channels % 4 == 0; output spatial == input spatial (s2 conv then x2).
    N, C_IN, C_OUT, H, W = 2, 4, 16, 16, 16
    params = init_params(wkey, C_IN, C_OUT)
    x = jax.random.uniform(xkey, (N, C_IN, H, W), dtype=jnp.float32)

    fwd = jax.jit(functools.partial(upsampler_forward, tile_rows=4))
    y = jax.block_until_ready(fwd(params, x))

    assert y.shape == (N, C_OUT // 4, H, W), y.shape
    assert bool(jnp.all(jnp.isfinite(y)))

    y_ref = jax.block_until_ready(jax.jit(upsampler_reference)(params, x))
    max_err = float(jnp.max(jnp.abs(y - y_ref)))
    assert max_err < 5e-2, max_err   # bf16 matmul operands vs f32 reference

    print("KERNEL_OK")
</pallas_src>

<mosaic_0001>
module attributes {stable_mosaic.version = 11 : i64} {
  func.func @_upsampler_conv_kernel(%arg0: i32, %arg1: i32, %arg2: memref<1x1x16x138xbf16, #tpu.memory_space<vmem>>, %arg3: memref<4x16x16xbf16, #tpu.memory_space<vmem>>, %arg4: memref<1xf32, #tpu.memory_space<smem>>, %arg5: memref<1x1x16x128xf32, #tpu.memory_space<vmem>>) attributes {dimension_semantics = [#tpu.dimension_semantics<parallel>, #tpu.dimension_semantics<parallel>], iteration_bounds = array<i64: 2, 2>, scalar_prefetch = 0 : i64, scratch_operands = 0 : i64, tpu.core_type = #tpu.core_type<tc>, window_params = [{transform_indices = @transform_0, window_bounds = array<i64: 1, 1, 16, 138>}, {pipeline_mode = #tpu.pipeline_mode<synchronous>, transform_indices = @transform_1, window_bounds = array<i64: 4, 16, 16>}, {transform_indices = @transform_2, window_bounds = array<i64: 1>}, {transform_indices = @transform_3, window_bounds = array<i64: 1, 1, 16, 128>}]} {
    %c0 = arith.constant 0 : index
    %c0_0 = arith.constant 0 : index
    %c0_1 = arith.constant 0 : index
    %c0_2 = arith.constant 0 : index
    %0 = vector.load %arg2[%c0, %c0_0, %c0_1, %c0_2] : memref<1x1x16x138xbf16, #tpu.memory_space<vmem>>, vector<1x1x16x138xbf16>
    %1 = vector.shape_cast %0 : vector<1x1x16x138xbf16> to vector<16x138xbf16>
    %cst = arith.constant 0.000000e+00 : f32
    %2 = vector.broadcast %cst : f32 to vector<16x128xf32>
    %c0_3 = arith.constant 0 : index
    %c0_4 = arith.constant 0 : index
    %c0_5 = arith.constant 0 : index
    %3 = vector.load %arg3[%c0_3, %c0_4, %c0_5] : memref<4x16x16xbf16, #tpu.memory_space<vmem>>, vector<1x16x16xbf16>
    %4 = vector.shape_cast %3 : vector<1x16x16xbf16> to vector<16x16xbf16>
    %5 = vector.extract_strided_slice %1 {offsets = [0, 0], sizes = [16, 128], strides = [1, 1]} : vector<16x138xbf16> to vector<16x128xbf16>
    %cst_6 = arith.constant dense<0.000000e+00> : vector<16x128xf32>
    %6 = tpu.matmul %4, %5, %cst_6 {dimension_numbers = #tpu.dot_dimension_numbers<[1], [0], [0], [1], [0, 0, 1, 1], [], []>} : vector<16x16xbf16>, vector<16x128xbf16>, vector<16x128xf32> -> vector<16x128xf32>
    %7 = arith.addf %2, %6 : vector<16x128xf32>
    %c1 = arith.constant 1 : index
    %c0_7 = arith.constant 0 : index
    %c0_8 = arith.constant 0 : index
    %8 = vector.load %arg3[%c1, %c0_7, %c0_8] : memref<4x16x16xbf16, #tpu.memory_space<vmem>>, vector<1x16x16xbf16>
    %9 = vector.shape_cast %8 : vector<1x16x16xbf16> to vector<16x16xbf16>
    %10 = vector.extract_strided_slice %1 {offsets = [0, 1], sizes = [16, 128], strides = [1, 1]} : vector<16x138xbf16> to vector<16x128xbf16>
    %cst_9 = arith.constant dense<0.000000e+00> : vector<16x128xf32>
    %11 = tpu.matmul %9, %10, %cst_9 {dimension_numbers = #tpu.dot_dimension_numbers<[1], [0], [0], [1], [0, 0, 1, 1], [], []>} : vector<16x16xbf16>, vector<16x128xbf16>, vector<16x128xf32> -> vector<16x128xf32>
    %12 = arith.addf %7, %11 : vector<16x128xf32>
    %c2 = arith.constant 2 : index
    %c0_10 = arith.constant 0 : index
    %c0_11 = arith.constant 0 : index
    %13 = vector.load %arg3[%c2, %c0_10, %c0_11] : memref<4x16x16xbf16, #tpu.memory_space<vmem>>, vector<1x16x16xbf16>
    %14 = vector.shape_cast %13 : vector<1x16x16xbf16> to vector<16x16xbf16>
    %15 = vector.extract_strided_slice %1 {offsets = [0, 9], sizes = [16, 128], strides = [1, 1]} : vector<16x138xbf16> to vector<16x128xbf16>
    %cst_12 = arith.constant dense<0.000000e+00> : vector<16x128xf32>
    %16 = tpu.matmul %14, %15, %cst_12 {dimension_numbers = #tpu.dot_dimension_numbers<[1], [0], [0], [1], [0, 0, 1, 1], [], []>} : vector<16x16xbf16>, vector<16x128xbf16>, vector<16x128xf32> -> vector<16x128xf32>
    %17 = arith.addf %12, %16 : vector<16x128xf32>
    %c3 = arith.constant 3 : index
    %c0_13 = arith.constant 0 : index
    %c0_14 = arith.constant 0 : index
    %18 = vector.load %arg3[%c3, %c0_13, %c0_14] : memref<4x16x16xbf16, #tpu.memory_space<vmem>>, vector<1x16x16xbf16>
    %19 = vector.shape_cast %18 : vector<1x16x16xbf16> to vector<16x16xbf16>
    %20 = vector.extract_strided_slice %1 {offsets = [0, 10], sizes = [16, 128], strides = [1, 1]} : vector<16x138xbf16> to vector<16x128xbf16>
    %cst_15 = arith.constant dense<0.000000e+00> : vector<16x128xf32>
    %21 = tpu.matmul %19, %20, %cst_15 {dimension_numbers = #tpu.dot_dimension_numbers<[1], [0], [0], [1], [0, 0, 1, 1], [], []>} : vector<16x16xbf16>, vector<16x128xbf16>, vector<16x128xf32> -> vector<16x128xf32>
    %22 = arith.addf %17, %21 : vector<16x128xf32>
    %c0_16 = arith.constant 0 : index
    %23 = memref.load %arg4[%c0_16] : memref<1xf32, #tpu.memory_space<smem>>
    %cst_17 = arith.constant 0.000000e+00 : f32
    %24 = vector.broadcast %cst_17 : f32 to vector<16x128xf32>
    %25 = arith.cmpf oge, %22, %24 : vector<16x128xf32>
    %26 = vector.broadcast %23 : f32 to vector<16x128xf32>
    %27 = arith.mulf %22, %26 : vector<16x128xf32>
    %28 = arith.select %25, %22, %27 : vector<16x128xi1>, vector<16x128xf32>
    %c0_18 = arith.constant 0 : index
    %c0_19 = arith.constant 0 : index
    %c0_20 = arith.constant 0 : index
    %c0_21 = arith.constant 0 : index
    %29 = vector.load %arg5[%c0_18, %c0_19, %c0_20, %c0_21] : memref<1x1x16x128xf32, #tpu.memory_space<vmem>>, vector<1x1x16x128xf32>
    %30 = vector.shape_cast %29 : vector<1x1x16x128xf32> to vector<16x128xf32>
    %31 = vector.shape_cast %28 : vector<16x128xf32> to vector<1x1x16x128xf32>
    tpu.vector_store %arg5[%c0_18, %c0_19, %c0_20, %c0_21], %31 {strides = array<i32>} : memref<1x1x16x128xf32, #tpu.memory_space<vmem>>, vector<1x1x16x128xf32>,
    return
  }
  func.func @transform_0(%arg0: i32, %arg1: i32) -> (i32, i32, i32, i32) {
    %c0_i32 = arith.constant 0 : i32
    %c0_i32_0 = arith.constant 0 : i32
    %c0_i32_1 = arith.constant 0 : i32
    return %arg0, %arg1, %c0_i32, %c0_i32_0 : i32, i32, i32, i32
  }
  func.func @transform_1(%arg0: i32, %arg1: i32) -> (i32, i32, i32) {
    %c0_i32 = arith.constant 0 : i32
    %c0_i32_0 = arith.constant 0 : i32
    %c0_i32_1 = arith.constant 0 : i32
    %c0_i32_2 = arith.constant 0 : i32
    return %c0_i32, %c0_i32_0, %c0_i32_1 : i32, i32, i32
  }
  func.func @transform_2(%arg0: i32, %arg1: i32) -> i32 {
    %c0_i32 = arith.constant 0 : i32
    %c0_i32_0 = arith.constant 0 : i32
    return %c0_i32 : i32
  }
  func.func @transform_3(%arg0: i32, %arg1: i32) -> (i32, i32, i32, i32) {
    %c0_i32 = arith.constant 0 : i32
    %c0_i32_0 = arith.constant 0 : i32
    %c0_i32_1 = arith.constant 0 : i32
    return %arg0, %arg1, %c0_i32, %c0_i32_0 : i32, i32, i32, i32
  }
}

</mosaic_0001>

<llo_original>
// kernel: upsampler_forward.1
$region0: #{upsampler_forward.1}
  #allocation0 [shape = 'u32[]', space=smem, size = 0x4, offset = 0x4, fixed_abs, tag = 'smem constant byte address 0x4 - core index']
  #allocation1 [shape = 'u32[144,128]{1,0:T(1,128)}', space=vmem, size = 0x12000, scoped, tag = 'internal scratch']
  #allocation2 [shape = 'f32[1]{0:T(128)S(6)}', space=smem, size = 0x200, scoped, tag = 'scoped memory for upsampler_forward.1']
  %s0 = inlined_call_operand.vmem [shape: bf16[2,2,16,138], index: 0, kind: input, shape index: {}]
  %s1 = inlined_call_operand.vmem [shape: bf16[4,16,16], index: 1, kind: input, shape index: {}]
  %s2 = inlined_call_operand.<no memory space> [shape: f32[1], index: 2, kind: input, shape index: {}]
  %s3 = inlined_call_operand.vmem [shape: f32[2,2,16,128], index: 3, kind: output, shape index: {}]
  %s4 = sld [smem:[#allocation0]]
  $region45: #{upsampler_forward.1} parent=0
    _
  %s6 = ssub.s32 1, %s4
  %s7 = scalar_select 0, %s6, %s4
  %8 = sst [smem:[#allocation2]] %s2
  loop: start=0, step=1, limit=6
  $region2: #{upsampler_forward.1} parent=0 // loop_pre_header
    _
  $region3: #{upsampler_forward.1} parent=0 // loop_header
    %s10 = sphi 0, %s14
    %p11 = scmp.ge.s32.totalorder %s10, 6
    %s17 = sphi 0, %s29
    %s18 = sphi 0, %s25
    %s19 = sphi 0, %s17
    %s20 = sphi 0, %s18
    %s21 = sphi 0, %s19
    %s22 = sphi 0, %s20
    %s34 = sphi 0, %s36
    %s37 = sphi 0, %s34
    %s38 = sphi 0, %s37
    %s54 = sphi 0, %s38
    %s58 = sphi 0, %s58
    %s60 = sphi 0, %s58
    %s61 = sphi 0, %s60
    %s75 = sphi 0, %s61
    %s79 = sphi 0, %s79
    %s81 = sphi 0, %s79
    %s82 = sphi 0, %s81
    %s96 = sphi 0, %s82
    %s104 = sphi 0, %s106
    %s107 = sphi 0, %s104
    %s108 = sphi 0, %s107
    %s124 = sphi 0, %s108
  $region4: #{upsampler_forward.1} parent=0 // loop_header_branch
    %13 = sbr.rel (%p11) target = $region8
  $region5: #{upsampler_forward.1} parent=0 // loop_body
    %s15 = ssub.s32 %s10, 1
    %s16 = ssub.s32 %s10, 2
    %s23 = sadd.s32 1, %s18
    %p24 = scmp.ge.s32.totalorder %s23, 2
    %s25 = scalar_select %p24, 0, %s23
    %s26 = sadd.s32 1, %s17
    %s27 = scalar_select %p24, %s26, %s17
    %p28 = scmp.ge.s32.totalorder %s27, 2
    %s29 = scalar_select %p28, 0, %s27
    %s30 = ssub.s32 %s17, %s29
    %s31 = ssub.s32 %s18, %s25
    %s32 = sor.u32 %s30, %s31
    %p33 = scmp.eq.s32.totalorder %s32, 0
    %s35 = sadd.s32 %s34, 1
    %s36 = scalar_select %p33, %s34, %s35
    %p39 = pneg %p33
    %p40 = scmp.eq.s32.totalorder %s10, 3
    %p41 = por %p39, %p40
    %p42 = scmp.ne.s32.totalorder %s34, %s37
    %p43 = scmp.eq.s32.totalorder %s10, 0
    %p44 = por %p42, %p43
    %p45 = scmp.ne.s32.totalorder %s34, %s37
    %p46 = scmp.eq.s32.totalorder %s15, 3
    %p47 = por %p45, %p46
    %p48 = scmp.ne.s32.totalorder %s37, %s38
    %p49 = scmp.eq.s32.totalorder %s15, 0
    %p50 = por %p48, %p49
    %p51 = scmp.ne.s32.totalorder %s37, %s38
    %p52 = scmp.eq.s32.totalorder %s16, 3
    %p53 = por %p51, %p52
    %p55 = scmp.ne.s32.totalorder %s38, %s54
    %p56 = scmp.eq.s32.totalorder %s16, 0
    %p57 = por %p55, %p56
    %s59 = sadd.s32 %s58, 1
    %p62 = scmp.eq.s32.totalorder %s10, 3
    %p63 = scmp.ne.s32.totalorder %s58, %s60
    %p64 = scmp.eq.s32.totalorder %s10, 0
    %p65 = por %p63, %p64
    %p66 = scmp.ne.s32.totalorder %s58, %s60
    %p67 = scmp.eq.s32.totalorder %s15, 3
    %p68 = por %p66, %p67
    %p69 = scmp.ne.s32.totalorder %s60, %s61
    %p70 = scmp.eq.s32.totalorder %s15, 0
    %p71 = por %p69, %p70
    %p72 = scmp.ne.s32.totalorder %s60, %s61
    %p73 = scmp.eq.s32.totalorder %s16, 3
    %p74 = por %p72, %p73
    %p76 = scmp.ne.s32.totalorder %s61, %s75
    %p77 = scmp.eq.s32.totalorder %s16, 0
    %p78 = por %p76, %p77
    %s80 = sadd.s32 %s79, 1
    %p83 = scmp.eq.s32.totalorder %s10, 3
    %p84 = scmp.ne.s32.totalorder %s79, %s81
    %p85 = scmp.eq.s32.totalorder %s10, 0
    %p86 = por %p84, %p85
    %p87 = scmp.ne.s32.totalorder %s79, %s81
    %p88 = scmp.eq.s32.totalorder %s15, 3
    %p89 = por %p87, %p88
    %p90 = scmp.ne.s32.totalorder %s81, %s82
    %p91 = scmp.eq.s32.totalorder %s15, 0
    %p92 = por %p90, %p91
    %p93 = scmp.ne.s32.totalorder %s81, %s82
    %p94 = scmp.eq.s32.totalorder %s16, 3
    %p95 = por %p93, %p94
    %p97 = scmp.ne.s32.totalorder %s82, %s96
    %p98 = scmp.eq.s32.totalorder %s16, 0
    %p99 = por %p97, %p98
    %s100 = ssub.s32 %s17, %s29
    %s101 = ssub.s32 %s18, %s25
    %s102 = sor.u32 %s100, %s101
    %p103 = scmp.eq.s32.totalorder %s102, 0
    %s105 = sadd.s32 %s104, 1
    %s106 = scalar_select %p103, %s104, %s105
    %p109 = pneg %p103
    %p110 = scmp.eq.s32.totalorder %s10, 3
    %p111 = por %p109, %p110
    %p112 = scmp.ne.s32.totalorder %s104, %s107
    %p113 = scmp.eq.s32.totalorder %s10, 0
    %p114 = por %p112, %p113
    %p115 = scmp.ne.s32.totalorder %s104, %s107
    %p116 = scmp.eq.s32.totalorder %s15, 3
    %p117 = por %p115, %p116
    %p118 = scmp.ne.s32.totalorder %s107, %s108
    %p119 = scmp.eq.s32.totalorder %s15, 0
    %p120 = por %p118, %p119
    %p121 = scmp.ne.s32.totalorder %s107, %s108
    %p122 = scmp.eq.s32.totalorder %s16, 3
    %p123 = por %p121, %p122
    %p125 = scmp.ne.s32.totalorder %s108, %s124
    %p126 = scmp.eq.s32.totalorder %s16, 0
    %p127 = por %p125, %p126
    %p128 = scmp.le.s32.totalorder 1, %s10
    %p129 = scmp.lt.s32.totalorder %s10, 5
    %p130 = pnand %p128, %p129
    %p131 = pneg %p130
    // Predicated region
    $region9: #{upsampler_forward.1} parent=5 // pred_check
      _
    $region10: #{upsampler_forward.1} parent=5 // pred_check_branch
      %133 = sbr.rel (%p130) target = $region12
    $region11: #{upsampler_forward.1} parent=5 // pred_region
      %s134 = ssub.s32 %s10, 1
      // Predicated region
      $region13: #{upsampler_forward.1} parent=11 // pred_check
        %p135 = pneg %p71
      $region14: #{upsampler_forward.1} parent=11 // pred_check_branch
        %137 = sbr.rel (%p135) target = $region16
      $region15: #{upsampler_forward.1} parent=11 // pred_region
        _
      $region16: #{upsampler_forward.1} parent=11 // pred_fallthru
        _
      // Predicated region
      $region17: #{upsampler_forward.1} parent=11 // pred_check
        %p138 = pneg %p92
      $region18: #{upsampler_forward.1} parent=11 // pred_check_branch
        %140 = sbr.rel (%p138) target = $region20
      $region19: #{upsampler_forward.1} parent=11 // pred_region
        _
      $region20: #{upsampler_forward.1} parent=11 // pred_fallthru
        _
    $region12: #{upsampler_forward.1} parent=5 // pred_fallthru
      _
    %p141 = scmp.lt.s32.totalorder %s10, 4
    // Predicated region
    $region21: #{upsampler_forward.1} parent=5 // pred_check
      %p142 = pneg %p141
    $region22: #{upsampler_forward.1} parent=5 // pred_check_branch
      %144 = sbr.rel (%p142) target = $region24
    $region23: #{upsampler_forward.1} parent=5 // pred_region
      // Predicated region
      $region25: #{upsampler_forward.1} parent=23 // pred_check
        %p145 = pneg %p44
      $region26: #{upsampler_forward.1} parent=23 // pred_check_branch
        %147 = sbr.rel (%p145) target = $region28
      $region27: #{upsampler_forward.1} parent=23 // pred_region
        %p148 = scmp.lt.s32.totalorder %s17, 1
        %s149 = scalar_select %p148, %s17, 1
        %p150 = scmp.lt.s32.totalorder %s18, 1
        %s151 = scalar_select %p150, %s18, 1
        %s152 = smul.addr %s151, 4
        %s153 = smul.addr %s149, 8
        %s154 = sadd.s32 %s152, %s153
        %s155 = smul.addr %s154, 4
        %s156 = scalar_lea.vmem %s0, %s155
      $region28: #{upsampler_forward.1} parent=23 // pred_fallthru
        _
    $region24: #{upsampler_forward.1} parent=5 // pred_fallthru
      _
    %p157 = scmp.le.s32.totalorder 1, %s10
    %p158 = scmp.lt.s32.totalorder %s10, 5
    %p159 = pnand %p157, %p158
    %p160 = pneg %p159
    // Predicated region
    $region29: #{upsampler_forward.1} parent=5 // pred_check
      _
    $region30: #{upsampler_forward.1} parent=5 // pred_check_branch
      %162 = sbr.rel (%p159) target = $region32
    $region31: #{upsampler_forward.1} parent=5 // pred_region
      %s163 = ssub.s32 %s10, 1
      %p164 = scmp.lt.s32.totalorder %s19, 1
      %s165 = scalar_select %p164, %s19, 1
      %p166 = scmp.lt.s32.totalorder %s20, 1
      %s167 = scalar_select %p166, %s20, 1
      %s168 = smul.addr %s167, 4
      %s169 = smul.addr %s165, 8
      %s170 = sadd.s32 %s168, %s169
      %s171 = smul.addr %s170, 4
      %s172 = scalar_lea.vmem %s0, %s171
      %p173 = pneg %p50
      %p174 = pneg %p47
      %p175 = pneg %p71
      %p176 = pneg %p68
      %p177 = pneg %p92
      %p178 = pneg %p89
      %p179 = pneg %p120
      %p180 = pneg %p117
      %p181 = scmp.lt.s32.totalorder %s19, 1
      %s182 = scalar_select %p181, %s19, 1
      %p183 = scmp.lt.s32.totalorder %s20, 1
      %s184 = scalar_select %p183, %s20, 1
      %s185 = smul.addr %s184, 2
      %s186 = smul.addr %s182, 4
      %s187 = sadd.s32 %s185, %s186
      %s188 = smul.addr %s187, 8
      %s189 = scalar_lea.vmem %s3, %s188
      %p190 = scmp.lt.s32.totalorder %s19, 1
      %s191 = scalar_select %p190, %s19, 1
      %p192 = scmp.lt.s32.totalorder %s20, 1
      %s193 = scalar_select %p192, %s20, 1
      %s194 = smul.addr %s193, 4
      %s195 = smul.addr %s191, 8
      %s196 = sadd.s32 %s194, %s195
      %s197 = smul.addr %s196, 4
      %s198 = scalar_lea.vmem %s0, %s197
      %p199 = scmp.lt.s32.totalorder %s19, 1
      %s200 = scalar_select %p199, %s19, 1
      %p201 = scmp.lt.s32.totalorder %s20, 1
      %s202 = scalar_select %p201, %s20, 1
      %s203 = smul.addr %s202, 2
      %s204 = smul.addr %s200, 4
      %s205 = sadd.s32 %s203, %s204
      %s206 = smul.addr %s205, 8
      %s207 = scalar_lea.vmem %s3, %s206
      %v209 = vld [vmem:[%s198] sm:$0xff]
      %v210 = vld [vmem:[%s198 + $0x8] sm:$0xff]
      %v211 = vld [vmem:[%s1] sm:$0xf]
      %v212 = vld [vmem:[%s1 + $0x4] sm:$0xf]
      %s213 = scalar_lea.vmem %s1, 8
      %v214 = vld [vmem:[%s213] sm:$0xf]
      %v215 = vld [vmem:[%s213 + $0x4] sm:$0xf]
      %v218 = vunpack.c.l.b16 %v214
      %v219 = vunpack.c.l.b16 %v215
      %v220 = vpack.c.b16 %v219, %v218
      %v223 = vunpack.c.l.b16 %v209
      %v224 = vunpack.c.h.b16 %v209
      %v225 = vunpack.c.l.b16 %v210
      %v226 = vunpack.c.h.b16 %v210
      %v227 = vpack.c.b16 %v225, %v223
      %v228 = vpack.c.b16 %v226, %v224
      %229 = vrot.lane.b32.xlu0 %v227, 127
      %v230 = vpop.permute.xlu0 %229
      %231 = vrot.lane.b32.xlu0 %v228, 127
      %v232 = vpop.permute.xlu0 %231
      %vm233 = vcmask 1039360
      %v234 = vsel %vm233, %v230, %v232
      %vm236 = vcmask 130048
      %v238 = vsel %vm236, %v220, 0
      %240 = vmatprep.subr.bf16.mxu0 0
      %241 = vmatpush1.bf16.msra.mxu0 0
      %242 = vmatprep.subr.bf16.mxu0 0
      %243 = vmatpush1.bf16.msra.mxu0 0
      %244 = vmatprep.subr.bf16.mxu0 0
      %245 = vmatpush1.bf16.msra.mxu0 0
      %246 = vmatprep.subr.bf16.mxu0 0
      %247 = vmatpush1.bf16.msra.mxu0 0
      %248 = vmatprep.subr.bf16.mxu0 0
      %249 = vmatpush1.bf16.msra.mxu0 0
      %250 = vmatprep.subr.bf16.mxu0 0
      %251 = vmatpush1.bf16.msra.mxu0 0
      %252 = vmatprep.subr.bf16.mxu0 0
      %253 = vmatpush1.bf16.msra.mxu0 0
      %254 = vmatprep.subr.bf16.mxu0 0
      %255 = vmatpush1.bf16.msra.mxu0 %v234
      %256 = vmatprep.subr.bf16.mxu0 0
      %257 = vmatpush2.bf16.msra.mxu0 0
      %258 = vmatprep.subr.bf16.mxu0 0
      %259 = vmatpush2.bf16.msra.mxu0 0
      %260 = vmatprep.subr.bf16.mxu0 0
      %261 = vmatpush2.bf16.msra.mxu0 0
      %262 = vmatprep.subr.bf16.mxu0 0
      %263 = vmatpush2.bf16.msra.mxu0 0
      %264 = vmatprep.subr.bf16.mxu0 0
      %265 = vmatpush2.bf16.msra.mxu0 0
      %266 = vmatprep.subr.bf16.mxu0 0
      %267 = vmatpush2.bf16.msra.mxu0 0
      %268 = vmatprep.subr.bf16.mxu0 0
      %269 = vmatpush2.bf16.msra.mxu0 0
      %270 = vmatprep.subr.bf16.mxu0 0
      %271 = vmatpush2.bf16.msra.mxu0 0
      %272 = vmatprep.mubr.bf16.mxu0 0
      %273 = vmatmul.mubr.bf16.gmra.mxu0 %v238
      %v274 = vpop.f32.mrf.mxu0
      %v275 = vadd.f32 0.0, %v274
      %v276 = vpop.f32.mrf.mxu0
      %v277 = vpop.f32.mrf.mxu0
      %v278 = vadd.f32 0.0, %v277
      %v279 = vpop.f32.mrf.mxu0
      %280 = vdwg.mxu0
      %v283 = vunpack.c.l.b16 %v211
      %v284 = vunpack.c.l.b16 %v212
      %v285 = vpack.c.b16 %v284, %v283
      %v288 = vsel %vm236, %v285, 0
      %290 = vmatprep.subr.bf16.mxu0 0
      %291 = vmatpush1.bf16.msra.mxu0 0
      %292 = vmatprep.subr.bf16.mxu0 0
      %293 = vmatpush1.bf16.msra.mxu0 0
      %294 = vmatprep.subr.bf16.mxu0 0
      %295 = vmatpush1.bf16.msra.mxu0 0
      %296 = vmatprep.subr.bf16.mxu0 0
      %297 = vmatpush1.bf16.msra.mxu0 0
      %298 = vmatprep.subr.bf16.mxu0 0
      %299 = vmatpush1.bf16.msra.mxu0 0
      %300 = vmatprep.subr.bf16.mxu0 0
      %301 = vmatpush1.bf16.msra.mxu0 0
      %302 = vmatprep.subr.bf16.mxu0 0
      %303 = vmatpush1.bf16.msra.mxu0 0
      %304 = vmatprep.subr.bf16.mxu0 0
      %305 = vmatpush1.bf16.msra.mxu0 %v227
      %306 = vmatprep.subr.bf16.mxu0 0
      %307 = vmatpush2.bf16.msra.mxu0 0
      %308 = vmatprep.subr.bf16.mxu0 0
      %309 = vmatpush2.bf16.msra.mxu0 0
      %310 = vmatprep.subr.bf16.mxu0 0
      %311 = vmatpush2.bf16.msra.mxu0 0
      %312 = vmatprep.subr.bf16.mxu0 0
      %313 = vmatpush2.bf16.msra.mxu0 0
      %314 = vmatprep.subr.bf16.mxu0 0
      %315 = vmatpush2.bf16.msra.mxu0 0
      %316 = vmatprep.subr.bf16.mxu0 0
      %317 = vmatpush2.bf16.msra.mxu0 0
      %318 = vmatprep.subr.bf16.mxu0 0
      %319 = vmatpush2.bf16.msra.mxu0 0
      %320 = vmatprep.subr.bf16.mxu0 0
      %321 = vmatpush2.bf16.msra.mxu0 0
      %322 = vmatprep.mubr.bf16.mxu0 0
      %323 = vmatmul.mubr.bf16.gmra.mxu0 %v288
      %v324 = vpop.f32.mrf.mxu0
      %v325 = vadd.f32 %v275, %v324
      %v326 = vpop.f32.mrf.mxu0
      %v327 = vpop.f32.mrf.mxu0
      %v328 = vadd.f32 %v278, %v327
      %v329 = vpop.f32.mrf.mxu0
      %330 = vdwg.mxu0
      %s331 = scalar_lea.vmem %s1, 16
      %v332 = vld [vmem:[%s331] sm:$0xf]
      %v333 = vld [vmem:[%s331 + $0x4] sm:$0xf]
      %v336 = vunpack.c.l.b16 %v332
      %v337 = vunpack.c.l.b16 %v333
      %v338 = vpack.c.b16 %v337, %v336
      %339 = vrot.lane.b32.xlu0 %v227, 119
      %v340 = vpop.permute.xlu0 %339
      %341 = vrot.lane.b32.xlu0 %v228, 119
      %v342 = vpop.permute.xlu0 %341
      %vm343 = vcmask 973824
      %v344 = vsel %vm343, %v340, %v342
      %v347 = vsel %vm236, %v338, 0
      %349 = vmatprep.subr.bf16.mxu0 0
      %350 = vmatpush1.bf16.msra.mxu0 0
      %351 = vmatprep.subr.bf16.mxu0 0
      %352 = vmatpush1.bf16.msra.mxu0 0
      %353 = vmatprep.subr.bf16.mxu0 0
      %354 = vmatpush1.bf16.msra.mxu0 0
      %355 = vmatprep.subr.bf16.mxu0 0
      %356 = vmatpush1.bf16.msra.mxu0 0
      %357 = vmatprep.subr.bf16.mxu0 0
      %358 = vmatpush1.bf16.msra.mxu0 0
      %359 = vmatprep.subr.bf16.mxu0 0
      %360 = vmatpush1.bf16.msra.mxu0 0
      %361 = vmatprep.subr.bf16.mxu0 0
      %362 = vmatpush1.bf16.msra.mxu0 0
      %363 = vmatprep.subr.bf16.mxu0 0
      %364 = vmatpush1.bf16.msra.mxu0 %v344
      %365 = vmatprep.subr.bf16.mxu0 0
      %366 = vmatpush2.bf16.msra.mxu0 0
      %367 = vmatprep.subr.bf16.mxu0 0
      %368 = vmatpush2.bf16.msra.mxu0 0
      %369 = vmatprep.subr.bf16.mxu0 0
      %370 = vmatpush2.bf16.msra.mxu0 0
      %371 = vmatprep.subr.bf16.mxu0 0
      %372 = vmatpush2.bf16.msra.mxu0 0
      %373 = vmatprep.subr.bf16.mxu0 0
      %374 = vmatpush2.bf16.msra.mxu0 0
      %375 = vmatprep.subr.bf16.mxu0 0
      %376 = vmatpush2.bf16.msra.mxu0 0
      %377 = vmatprep.subr.bf16.mxu0 0
      %378 = vmatpush2.bf16.msra.mxu0 0
      %379 = vmatprep.subr.bf16.mxu0 0
      %380 = vmatpush2.bf16.msra.mxu0 0
      %381 = vmatprep.mubr.bf16.mxu0 0
      %382 = vmatmul.mubr.bf16.gmra.mxu0 %v347
      %v383 = vpop.f32.mrf.mxu0
      %v384 = vadd.f32 0.0, %v383
      %v385 = vpop.f32.mrf.mxu0
      %v386 = vpop.f32.mrf.mxu0
      %v387 = vadd.f32 0.0, %v386
      %v388 = vpop.f32.mrf.mxu0
      %389 = vdwg.mxu0
      %v390 = vadd.f32 %v325, %v384
      %v391 = vadd.f32 %v328, %v387
      %s392 = scalar_lea.vmem %s1, 24
      %v393 = vld [vmem:[%s392] sm:$0xf]
      %v394 = vld [vmem:[%s392 + $0x4] sm:$0xf]
      %v397 = vunpack.c.l.b16 %v393
      %v398 = vunpack.c.l.b16 %v394
      %v399 = vpack.c.b16 %v398, %v397
      %400 = vrot.lane.b32.xlu0 %v227, 118
      %v401 = vpop.permute.xlu0 %400
      %402 = vrot.lane.b32.xlu0 %v228, 118
      %v403 = vpop.permute.xlu0 %402
      %vm404 = vcmask 965632
      %v405 = vsel %vm404, %v401, %v403
      %v408 = vsel %vm236, %v399, 0
      %410 = vmatprep.subr.bf16.mxu0 0
      %411 = vmatpush1.bf16.msra.mxu0 0
      %412 = vmatprep.subr.bf16.mxu0 0
      %413 = vmatpush1.bf16.msra.mxu0 0
      %414 = vmatprep.subr.bf16.mxu0 0
      %415 = vmatpush1.bf16.msra.mxu0 0
      %416 = vmatprep.subr.bf16.mxu0 0
      %417 = vmatpush1.bf16.msra.mxu0 0
      %418 = vmatprep.subr.bf16.mxu0 0
      %419 = vmatpush1.bf16.msra.mxu0 0
      %420 = vmatprep.subr.bf16.mxu0 0
      %421 = vmatpush1.bf16.msra.mxu0 0
      %422 = vmatprep.subr.bf16.mxu0 0
      %423 = vmatpush1.bf16.msra.mxu0 0
      %424 = vmatprep.subr.bf16.mxu0 0
      %425 = vmatpush1.bf16.msra.mxu0 %v405
      %426 = vmatprep.subr.bf16.mxu0 0
      %427 = vmatpush2.bf16.msra.mxu0 0
      %428 = vmatprep.subr.bf16.mxu0 0
      %429 = vmatpush2.bf16.msra.mxu0 0
      %430 = vmatprep.subr.bf16.mxu0 0
      %431 = vmatpush2.bf16.msra.mxu0 0
      %432 = vmatprep.subr.bf16.mxu0 0
      %433 = vmatpush2.bf16.msra.mxu0 0
      %434 = vmatprep.subr.bf16.mxu0 0
      %435 = vmatpush2.bf16.msra.mxu0 0
      %436 = vmatprep.subr.bf16.mxu0 0
      %437 = vmatpush2.bf16.msra.mxu0 0
      %438 = vmatprep.subr.bf16.mxu0 0
      %439 = vmatpush2.bf16.msra.mxu0 0
      %440 = vmatprep.subr.bf16.mxu0 0
      %441 = vmatpush2.bf16.msra.mxu0 0
      %442 = vmatprep.mubr.bf16.mxu0 0
      %443 = vmatmul.mubr.bf16.gmra.mxu0 %v408
      %v444 = vpop.f32.mrf.mxu0
      %v445 = vadd.f32 0.0, %v444
      %v446 = vpop.f32.mrf.mxu0
      %v447 = vpop.f32.mrf.mxu0
      %v448 = vadd.f32 0.0, %v447
      %v449 = vpop.f32.mrf.mxu0
      %450 = vdwg.mxu0
      %v451 = vadd.f32 %v390, %v445
      %v452 = vadd.f32 %v391, %v448
      %s453 = sld [smem:[#allocation2]]
      %vm454 = vcmp.ge.f32.partialorder %v451, 0.0
      %vm455 = vcmp.ge.f32.partialorder %v452, 0.0
      %v456 = vstv %s453
      %v457 = vmul.f32 %v451, %v456
      %v458 = vmul.f32 %v452, %v456
      %v459 = vsel %vm454, %v451, %v457
      %v460 = vsel %vm455, %v452, %v458
      %461 = vst [vmem:[%s207] sm:$0xff] %v459
      %462 = vst [vmem:[%s207 + $0x8] sm:$0xff] %v460
      %p463 = scmp.lt.s32.totalorder %s19, 1
      %s464 = scalar_select %p463, %s19, 1
      %p465 = scmp.lt.s32.totalorder %s20, 1
      %s466 = scalar_select %p465, %s20, 1
      %s467 = smul.addr %s466, 2
      %s468 = smul.addr %s464, 4
      %s469 = sadd.s32 %s467, %s468
      %s470 = smul.addr %s469, 8
      %s471 = scalar_lea.vmem %s3, %s470
      // Predicated region
      $region33: #{upsampler_forward.1} parent=31 // pred_check
        %p472 = pneg %p117
      $region34: #{upsampler_forward.1} parent=31 // pred_check_branch
        %474 = sbr.rel (%p472) target = $region36
      $region35: #{upsampler_forward.1} parent=31 // pred_region
        _
      $region36: #{upsampler_forward.1} parent=31 // pred_fallthru
        _
    $region32: #{upsampler_forward.1} parent=5 // pred_fallthru
      _
    %p475 = scmp.le.s32.totalorder 2, %s10
    // Predicated region
    $region37: #{upsampler_forward.1} parent=5 // pred_check
      %p476 = pneg %p475
    $region38: #{upsampler_forward.1} parent=5 // pred_check_branch
      %478 = sbr.rel (%p476) target = $region40
    $region39: #{upsampler_forward.1} parent=5 // pred_region
      %s479 = ssub.s32 %s10, 2
      // Predicated region
      $region41: #{upsampler_forward.1} parent=39 // pred_check
        %p480 = pneg %p123
      $region42: #{upsampler_forward.1} parent=39 // pred_check_branch
        %482 = sbr.rel (%p480) target = $region44
      $region43: #{upsampler_forward.1} parent=39 // pred_region
        %p483 = scmp.lt.s32.totalorder %s21, 1
        %s484 = scalar_select %p483, %s21, 1
        %p485 = scmp.lt.s32.totalorder %s22, 1
        %s486 = scalar_select %p485, %s22, 1
        %s487 = smul.addr %s486, 2
        %s488 = smul.addr %s484, 4
        %s489 = sadd.s32 %s487, %s488
        %s490 = smul.addr %s489, 8
        %s491 = scalar_lea.vmem %s3, %s490
      $region44: #{upsampler_forward.1} parent=39 // pred_fallthru
        _
    $region40: #{upsampler_forward.1} parent=5 // pred_fallthru
      _
  $region6: #{upsampler_forward.1} parent=0 // loop_footer
    %s14 = sadd.s32 1, %s10
  $region7: #{upsampler_forward.1} parent=0 // loop_footer_branch
    %9 = sbr.rel target = $region3
  $region8: #{upsampler_forward.1} parent=0 // loop_exit
    _

</llo_original>
